<compile_context>
chip_gen: v6e
topology: v6e:2x2x1
jax: 0.10.0
libtpu: 0.0.40
codegen_flags: <defaults>
</compile_context>

<pallas_src>
import functools
import warnings

import jax
import jax.numpy as jnp
from jax.experimental import pallas as pl
from jax.experimental.pallas import tpu as pltpu


def _mixup_batch_kernel(lam_ref, x_ref, o_ref):
    """Mix one (B, TILE) lane-dense block of the flattened image batch.

    lam_ref : SMEM (1,) f32   -- mixing coefficient lambda
    x_ref   : VMEM (B, TILE)  -- input tile (full batch dim, lane tile of CHW)
    o_ref   : VMEM (B, TILE)  -- mixed output tile (aliases the input in HBM)
    """
    lam = lam_ref[0].astype(x_ref.dtype)
    x = x_ref[...]
    # torch roll(1, 0): out[i] = x[(i - 1) % B]  == pltpu.roll(x, shift=1, axis=0)
    x_rolled = pltpu.roll(x, shift=1, axis=0)
    # FMA-style blend: rolled + lam*(x - rolled) == lam*x + (1-lam)*rolled
    o_ref[...] = x_rolled + lam * (x - x_rolled)


def _pick_tile(chw: int, b: int, itemsize: int) -> int:
    """Pick a lane-dense CHW tile size.

    - Budget ~4 MiB per block using the sublane-padded B (real VMEM layout),
      so the ~4x in-flight footprint (in + out, double-buffered) stays under
      the explicit 32 MiB scoped-VMEM limit on every TPU generation.
    - Guarantee >= 2 grid blocks whenever CHW > 128 so v7x's second
      TensorCore gets work under dimension_semantics=("parallel",).
    - Never fall back to a single full-CHW block or a 128-lane divisor:
      non-divisible CHW just gets one masked edge block via pl.cdiv.
    """
    if chw <= 128:
        # Tiny last dim: single block, block dim == full array dim (allowed).
        return chw
    packing = max(1, 4 // itemsize)            # 1 for f32, 2 for bf16, 4 for 8-bit
    sublane = 8 * packing
    padded_b = ((b + sublane - 1) // sublane) * sublane
    budget = 4 << 20                           # ~4 MiB per block
    max_lanes = (budget // (padded_b * itemsize)) // 128 * 128
    max_lanes = max(128, max_lanes)
    chw_pad = ((chw + 127) // 128) * 128
    tile = min(max_lanes, chw_pad)
    if tile >= chw:
        # Split into (at least) two blocks so both v7x TensorCores stream.
        half = (chw + 1) // 2
        tile = ((half + 127) // 128) * 128
    return tile


def random_mixup(batch, target, *, num_classes, p=0.5, alpha=1.0, key=None):
    """JAX/Pallas equivalent of RandomMixup.forward.

    Returns (mixed_batch, mixed_one_hot_target).  For best performance, jit
    this function with donate_argnums=(0,) so the input batch buffer can be
    reused in place by the kernel (input_output_aliases).
    """
    if batch.ndim != 4:
        raise ValueError(f"Batch ndim should be 4. Got {batch.ndim}")
    if target.ndim != 1:
        raise ValueError(f"Target ndim should be 1. Got {target.ndim}")
    if not jnp.issubdtype(batch.dtype, jnp.floating):
        raise TypeError(f"Batch dtype should be a float tensor. Got {batch.dtype}.")
    if key is None:
        key = jax.random.PRNGKey(0)

    B, C, H, W = batch.shape
    CHW = C * H * W

    # One-hot encoding of integer targets (tiny; not the hot path).
    t_oh = jax.nn.one_hot(target, num_classes, dtype=batch.dtype)
    x_flat = batch.reshape(B, CHW)

    # Randomness (replaces torch.rand / torch._sample_dirichlet).
    k_apply, k_beta = jax.random.split(key)
    apply_mix = jax.random.uniform(k_apply, ()) < p
    lam = jax.random.beta(k_beta, alpha, alpha).astype(jnp.float32)

    tile = _pick_tile(CHW, B, jnp.dtype(batch.dtype).itemsize)
    grid = (pl.cdiv(CHW, tile),)

    mix_call = pl.pallas_call(
        _mixup_batch_kernel,
        out_shape=jax.ShapeDtypeStruct((B, CHW), batch.dtype),
        grid=grid,
        in_specs=[
            pl.BlockSpec(memory_space=pltpu.MemorySpace.SMEM),  # lambda scalar (1,)
            pl.BlockSpec((B, tile), lambda j: (0, j)),          # batch tile, B whole
        ],
        out_specs=pl.BlockSpec((B, tile), lambda j: (0, j)),
        # Mixed batch overwrites the input batch buffer.
        # INVARIANT: safe only because B is never tiled (each output block
        # depends only on its own input block).  Requires caller-side donation
        # of `batch` to actually avoid a defensive copy.
        input_output_aliases={1: 0},
        compiler_params=pltpu.CompilerParams(
            dimension_semantics=("parallel",),
            vmem_limit_bytes=32 * 1024 * 1024,
        ),
    )

    def _apply(x_flat, t_oh, lam):
        xo = mix_call(lam.reshape(1), x_flat)
        # Target mix in plain jnp: (B, num_classes) is tiny and 100 lanes would
        # force masked partial stores inside the kernel.
        lam_t = lam.astype(t_oh.dtype)
        t_rolled = jnp.roll(t_oh, 1, axis=0)
        to = t_rolled + lam_t * (t_oh - t_rolled)
        return xo, to

    def _identity(x_flat, t_oh, lam):
        return x_flat, t_oh

    # Skip the kernel (and its full HBM read+write) entirely on the
    # probability-(1-p) "don't apply" branch.
    xo, to = jax.lax.cond(apply_mix, _apply, _identity, x_flat, t_oh, lam)

    return xo.reshape(B, C, H, W), to


def _reference(batch, target, *, num_classes, p, alpha, key):
    """Pure-JAX reference for correctness checking (same blend formula / RNG)."""
    t_oh = jax.nn.one_hot(target, num_classes, dtype=batch.dtype)
    k_apply, k_beta = jax.random.split(key)
    apply_mix = jax.random.uniform(k_apply, ()) < p
    lam = jax.random.beta(k_beta, alpha, alpha).astype(jnp.float32).astype(batch.dtype)
    b_rolled = jnp.roll(batch, 1, axis=0)
    t_rolled = jnp.roll(t_oh, 1, axis=0)
    b_mixed = b_rolled + lam * (batch - b_rolled)
    t_mixed = t_rolled + lam * (t_oh - t_rolled)
    b_out = jnp.where(apply_mix, b_mixed, batch)
    t_out = jnp.where(apply_mix, t_mixed, t_oh)
    return b_out, t_out


if __name__ == "__main__":
    warnings.filterwarnings("ignore")  # silence potential donation warnings

    NUM_CLASSES = 100
    P = 0.5
    ALPHA = 1.0

    # Jitted + donated entry point: donation lets input_output_aliases reuse
    # the batch buffer in place (eliminates an extra full HBM read+write).
    mixup_jit = jax.jit(
        random_mixup,
        static_argnames=("num_classes", "p", "alpha"),
        donate_argnums=(0,),
    )
    ref = functools.partial(_reference, num_classes=NUM_CLASSES, p=P, alpha=ALPHA)

    root = jax.random.PRNGKey(0)
    k_data, k_tgt, k_mix_root = jax.random.split(root, 3)

    # Case 1: CIFAR-ish small shape (CHW = 1024, even 128-multiple -> 2 blocks).
    # Case 2: non-128-aligned CHW (3*11*11 = 363) -> ragged/masked edge block.
    cases = [
        (2, 4, 16, 16),
        (4, 3, 11, 11),
    ]

    for ci, (B, C, H, W) in enumerate(cases):
        kd = jax.random.fold_in(k_data, ci)
        kt = jax.random.fold_in(k_tgt, ci)
        batch = jax.random.normal(kd, (B, C, H, W), dtype=jnp.float32)
        target = jax.random.randint(kt, (B,), 0, NUM_CLASSES, dtype=jnp.int32)

        # Several mix keys so both the "apply" and "don't apply" branches get hit.
        for i in range(4):
            k_mix = jax.random.fold_in(jax.random.fold_in(k_mix_root, ci), i)

            # Fresh copy because `batch` is donated to the jitted call.
            out_batch, out_target = mixup_jit(
                jnp.copy(batch), target,
                num_classes=NUM_CLASSES, p=P, alpha=ALPHA, key=k_mix,
            )
            jax.block_until_ready((out_batch, out_target))

            ref_batch, ref_target = ref(batch, target, key=k_mix)
            assert out_batch.shape == (B, C, H, W)
            assert out_target.shape == (B, NUM_CLASSES)
            assert jnp.allclose(out_batch, ref_batch, atol=1e-6, rtol=1e-6)
            assert jnp.allclose(out_target, ref_target, atol=1e-6, rtol=1e-6)

    print("KERNEL_OK")
</pallas_src>

<mosaic_0001>
module attributes {stable_mosaic.version = 11 : i64} {
  func.func @_mixup_batch_kernel(%arg0: i32, %arg1: memref<1xf32, #tpu.memory_space<smem>>, %arg2: memref<2x512xf32, #tpu.memory_space<vmem>>, %arg3: memref<2x512xf32, #tpu.memory_space<vmem>>) attributes {dimension_semantics = [#tpu.dimension_semantics<parallel>], iteration_bounds = array<i64: 2>, scalar_prefetch = 0 : i64, scratch_operands = 0 : i64, tpu.core_type = #tpu.core_type<tc>, window_params = [{transform_indices = @transform_0, window_bounds = array<i64: 1>}, {transform_indices = @transform_1, window_bounds = array<i64: 2, 512>}, {transform_indices = @transform_2, window_bounds = array<i64: 2, 512>}]} {
    %c0 = arith.constant 0 : index
    %0 = memref.load %arg1[%c0] : memref<1xf32, #tpu.memory_space<smem>>
    %c0_0 = arith.constant 0 : index
    %c0_1 = arith.constant 0 : index
    %1 = vector.load %arg2[%c0_0, %c0_1] : memref<2x512xf32, #tpu.memory_space<vmem>>, vector<2x512xf32>
    %c1_i32 = arith.constant 1 : i32
    %2 = tpu.dynamic_rotate %1 by %c1_i32 dim 0 : vector<2x512xf32>, i32 -> vector<2x512xf32>
    %3 = arith.subf %1, %2 : vector<2x512xf32>
    %4 = vector.broadcast %0 : f32 to vector<2x512xf32>
    %5 = arith.mulf %4, %3 : vector<2x512xf32>
    %6 = arith.addf %2, %5 : vector<2x512xf32>
    %c0_2 = arith.constant 0 : index
    %c0_3 = arith.constant 0 : index
    %7 = vector.load %arg3[%c0_2, %c0_3] : memref<2x512xf32, #tpu.memory_space<vmem>>, vector<2x512xf32>
    tpu.vector_store %arg3[%c0_2, %c0_3], %6 {strides = array<i32>} : memref<2x512xf32, #tpu.memory_space<vmem>>, vector<2x512xf32>,
    return
  }
  func.func @transform_0(%arg0: i32) -> i32 {
    %c0_i32 = arith.constant 0 : i32
    %c0_i32_0 = arith.constant 0 : i32
    return %c0_i32 : i32
  }
  func.func @transform_1(%arg0: i32) -> (i32, i32) {
    %c0_i32 = arith.constant 0 : i32
    %c0_i32_0 = arith.constant 0 : i32
    return %c0_i32, %arg0 : i32, i32
  }
  func.func @transform_2(%arg0: i32) -> (i32, i32) {
    %c0_i32 = arith.constant 0 : i32
    %c0_i32_0 = arith.constant 0 : i32
    return %c0_i32, %arg0 : i32, i32
  }
}

</mosaic_0001>

<llo_original>
// kernel: branch_1_fun.4
$region0: #{branch_1_fun.4}
  #allocation0 [shape = 'u32[]', space=smem, size = 0x4, offset = 0x4, fixed_abs, tag = 'smem constant byte address 0x4 - core index']
  #allocation1 [shape = 'u32[144,128]{1,0:T(1,128)}', space=vmem, size = 0x12000, scoped, tag = 'internal scratch']
  #allocation2 [shape = 'f32[1]{0:T(128)S(6)}', space=smem, size = 0x200, scoped, tag = 'scoped memory for branch_1_fun.4']
  %s0 = inlined_call_operand.<no memory space> [shape: f32[1], index: 0, kind: input, shape index: {}]
  %s1 = inlined_call_operand.vmem [shape: f32[2,1024], index: 1, kind: input, shape index: {}, may-alias: {1,2}]
  %s2 = inlined_call_operand.vmem [shape: f32[2,1024], index: 2, kind: output, shape index: {}, may-alias: {1,2}]
  %s3 = sld [smem:[#allocation0]]
  $region41: #{branch_1_fun.4} parent=0
    _
  %s5 = ssub.s32 1, %s3
  %s6 = scalar_select 0, %s5, %s3
  %7 = sst [smem:[#allocation2]] %s0
  loop: start=0, step=1, limit=4
  $region2: #{branch_1_fun.4} parent=0 // loop_pre_header
    _
  $region3: #{branch_1_fun.4} parent=0 // loop_header
    %s9 = sphi 0, %s13
    %p10 = scmp.ge.s32.totalorder %s9, 4
    %s17 = sphi 0, %s17
    %s19 = sphi 0, %s17
    %s20 = sphi 0, %s19
    %s34 = sphi 0, %s20
    %s40 = sphi 0, %s42
    %s43 = sphi 0, %s40
    %s44 = sphi 0, %s43
    %s60 = sphi 0, %s44
    %s66 = sphi 0, %s68
    %s69 = sphi 0, %s66
    %s70 = sphi 0, %s69
    %s86 = sphi 0, %s70
  $region4: #{branch_1_fun.4} parent=0 // loop_header_branch
    %12 = sbr.rel (%p10) target = $region8
  $region5: #{branch_1_fun.4} parent=0 // loop_body
    %s14 = ssub.s32 %s9, 1
    %s15 = ssub.s32 %s9, 2
    %s16 = sadd.s32 %s9, 1
    %s18 = sadd.s32 %s17, 1
    %p21 = scmp.eq.s32.totalorder %s9, 1
    %p22 = scmp.ne.s32.totalorder %s17, %s19
    %p23 = scmp.eq.s32.totalorder %s9, 0
    %p24 = por %p22, %p23
    %p25 = scmp.ne.s32.totalorder %s17, %s19
    %p26 = scmp.eq.s32.totalorder %s14, 1
    %p27 = por %p25, %p26
    %p28 = scmp.ne.s32.totalorder %s19, %s20
    %p29 = scmp.eq.s32.totalorder %s14, 0
    %p30 = por %p28, %p29
    %p31 = scmp.ne.s32.totalorder %s19, %s20
    %p32 = scmp.eq.s32.totalorder %s15, 1
    %p33 = por %p31, %p32
    %p35 = scmp.ne.s32.totalorder %s20, %s34
    %p36 = scmp.eq.s32.totalorder %s15, 0
    %p37 = por %p35, %p36
    %s38 = ssub.s32 %s9, %s16
    %p39 = scmp.eq.s32.totalorder %s38, 0
    %s41 = sadd.s32 %s40, 1
    %s42 = scalar_select %p39, %s40, %s41
    %p45 = pneg %p39
    %p46 = scmp.eq.s32.totalorder %s9, 1
    %p47 = por %p45, %p46
    %p48 = scmp.ne.s32.totalorder %s40, %s43
    %p49 = scmp.eq.s32.totalorder %s9, 0
    %p50 = por %p48, %p49
    %p51 = scmp.ne.s32.totalorder %s40, %s43
    %p52 = scmp.eq.s32.totalorder %s14, 1
    %p53 = por %p51, %p52
    %p54 = scmp.ne.s32.totalorder %s43, %s44
    %p55 = scmp.eq.s32.totalorder %s14, 0
    %p56 = por %p54, %p55
    %p57 = scmp.ne.s32.totalorder %s43, %s44
    %p58 = scmp.eq.s32.totalorder %s15, 1
    %p59 = por %p57, %p58
    %p61 = scmp.ne.s32.totalorder %s44, %s60
    %p62 = scmp.eq.s32.totalorder %s15, 0
    %p63 = por %p61, %p62
    %s64 = ssub.s32 %s9, %s16
    %p65 = scmp.eq.s32.totalorder %s64, 0
    %s67 = sadd.s32 %s66, 1
    %s68 = scalar_select %p65, %s66, %s67
    %p71 = pneg %p65
    %p72 = scmp.eq.s32.totalorder %s9, 1
    %p73 = por %p71, %p72
    %p74 = scmp.ne.s32.totalorder %s66, %s69
    %p75 = scmp.eq.s32.totalorder %s9, 0
    %p76 = por %p74, %p75
    %p77 = scmp.ne.s32.totalorder %s66, %s69
    %p78 = scmp.eq.s32.totalorder %s14, 1
    %p79 = por %p77, %p78
    %p80 = scmp.ne.s32.totalorder %s69, %s70
    %p81 = scmp.eq.s32.totalorder %s14, 0
    %p82 = por %p80, %p81
    %p83 = scmp.ne.s32.totalorder %s69, %s70
    %p84 = scmp.eq.s32.totalorder %s15, 1
    %p85 = por %p83, %p84
    %p87 = scmp.ne.s32.totalorder %s70, %s86
    %p88 = scmp.eq.s32.totalorder %s15, 0
    %p89 = por %p87, %p88
    %p90 = scmp.le.s32.totalorder 1, %s9
    %p91 = scmp.lt.s32.totalorder %s9, 3
    %p92 = pnand %p90, %p91
    %p93 = pneg %p92
    // Predicated region
    $region9: #{branch_1_fun.4} parent=5 // pred_check
      _
    $region10: #{branch_1_fun.4} parent=5 // pred_check_branch
      %95 = sbr.rel (%p92) target = $region12
    $region11: #{branch_1_fun.4} parent=5 // pred_region
      %s96 = ssub.s32 %s9, 1
      // Predicated region
      $region13: #{branch_1_fun.4} parent=11 // pred_check
        %p97 = pneg %p30
      $region14: #{branch_1_fun.4} parent=11 // pred_check_branch
        %99 = sbr.rel (%p97) target = $region16
      $region15: #{branch_1_fun.4} parent=11 // pred_region
        _
      $region16: #{branch_1_fun.4} parent=11 // pred_fallthru
        _
    $region12: #{branch_1_fun.4} parent=5 // pred_fallthru
      _
    %p100 = scmp.lt.s32.totalorder %s9, 2
    // Predicated region
    $region17: #{branch_1_fun.4} parent=5 // pred_check
      %p101 = pneg %p100
    $region18: #{branch_1_fun.4} parent=5 // pred_check_branch
      %103 = sbr.rel (%p101) target = $region20
    $region19: #{branch_1_fun.4} parent=5 // pred_region
      // Predicated region
      $region21: #{branch_1_fun.4} parent=19 // pred_check
        %p104 = pneg %p50
      $region22: #{branch_1_fun.4} parent=19 // pred_check_branch
        %106 = sbr.rel (%p104) target = $region24
      $region23: #{branch_1_fun.4} parent=19 // pred_region
        %s107 = smul.u32 4, %s9
        %p108 = scmp.lt.s32.totalorder %s107, 7
        %s109 = scalar_select %p108, %s107, 7
        %s110 = smul.addr %s109, 2
        %s111 = scalar_lea.vmem %s1, %s110
        %s112 = smul.u32 4, %s9
      $region24: #{branch_1_fun.4} parent=19 // pred_fallthru
        _
    $region20: #{branch_1_fun.4} parent=5 // pred_fallthru
      _
    %p113 = scmp.le.s32.totalorder 1, %s9
    %p114 = scmp.lt.s32.totalorder %s9, 3
    %p115 = pnand %p113, %p114
    %p116 = pneg %p115
    // Predicated region
    $region25: #{branch_1_fun.4} parent=5 // pred_check
      _
    $region26: #{branch_1_fun.4} parent=5 // pred_check_branch
      %118 = sbr.rel (%p115) target = $region28
    $region27: #{branch_1_fun.4} parent=5 // pred_region
      %s119 = ssub.s32 %s9, 1
      %p120 = pneg %p30
      %p121 = pneg %p27
      %s122 = smul.u32 4, %s14
      %p123 = scmp.lt.s32.totalorder %s122, 7
      %s124 = scalar_select %p123, %s122, 7
      %s125 = smul.addr %s124, 2
      %s126 = scalar_lea.vmem %s1, %s125
      %p127 = pneg %p56
      %p128 = pneg %p53
      %p129 = pneg %p82
      %p130 = pneg %p79
      %s131 = smul.u32 4, %s14
      %p132 = scmp.lt.s32.totalorder %s131, 7
      %s133 = scalar_select %p132, %s131, 7
      %s134 = smul.addr %s133, 2
      %s135 = scalar_lea.vmem %s2, %s134
      %s136 = smul.u32 4, %s14
      %p137 = scmp.lt.s32.totalorder %s136, 7
      %s138 = scalar_select %p137, %s136, 7
      %s139 = smul.addr %s138, 2
      %s140 = scalar_lea.vmem %s1, %s139
      %s141 = smul.u32 4, %s14
      %s142 = smul.u32 4, %s14
      %p143 = scmp.lt.s32.totalorder %s142, 7
      %s144 = scalar_select %p143, %s142, 7
      %s145 = smul.addr %s144, 2
      %s146 = scalar_lea.vmem %s2, %s145
      %s147 = smul.u32 4, %s14
      %s148 = sld [smem:[#allocation2]]
      %v149 = vld [vmem:[%s140] sm:$0xff]
      %v151 = vcombine.high %v149, %v149
      %v153 = vunpack.c.l.s4 1983009808
      %v154 = vunpack.c.0.s8 %v153
      %v155 = vlaneseq
      %v156 = vshrl.u32 %v155, 7
      %v157 = vsub.s32 %v154, %v156
      %v158 = vrot.slane %v149, %v157
      %v160 = vunpack.c.l.s4 1983009808
      %v161 = vunpack.c.0.s8 %v160
      %v162 = vlaneseq
      %v163 = vshrl.u32 %v162, 7
      %v164 = vsub.s32 %v161, %v163
      %v165 = vrot.slane %v151, %v164
      %v166 = vcombine.high %v158, %v158
      %v167 = vcombine.high %v165, %v165
      %vm172 = vcmask 1047554
      %v173 = vrot.slane %v158, 6
      %v174 = vsel %vm172, %v173, %v158
      %v175 = vrot.slane %v166, 6
      %v176 = vsel %vm172, %v175, %v166
      %v177 = vrot.slane %v165, 6
      %v178 = vsel %vm172, %v177, %v165
      %v179 = vrot.slane %v167, 6
      %v180 = vsel %vm172, %v179, %v167
      %v181 = vrot.slane %v174, 6
      %v182 = vrot.slane %v176, 6
      %v183 = vrot.slane %v178, 6
      %v184 = vrot.slane %v180, 6
      %v185 = vsel %vm172, %v181, %v158
      %v186 = vsel %vm172, %v182, %v166
      %v187 = vsel %vm172, %v183, %v165
      %v188 = vsel %vm172, %v184, %v167
      %v193 = vcombine.low %v185, %v186
      %v194 = vcombine.low %v187, %v188
      %v196 = vunpack.c.l.s4 1983009808
      %v197 = vunpack.c.0.s8 %v196
      %v198 = vlaneseq
      %v199 = vshrl.u32 %v198, 7
      %v200 = vsub.s32 %v197, %v199
      %v201 = vrot.slane %v193, %v200
      %v203 = vunpack.c.l.s4 1983009808
      %v204 = vunpack.c.0.s8 %v203
      %v205 = vlaneseq
      %v206 = vshrl.u32 %v205, 7
      %v207 = vsub.s32 %v204, %v206
      %v208 = vrot.slane %v194, %v207
      %v209 = vcombine.low %v201, %v208
      %v210 = vcombine.high %v201, %v208
      %vm211 = vcmask 1040384
      %vm212 = vcmask 1042434
      %vm213 = vmor %vm211, %vm212
      %vm214 = vcmask 1044484
      %vm215 = vmor %vm213, %vm214
      %vm216 = vcmask 1046534
      %vm217 = vmor %vm215, %vm216
      %v218 = vrot.slane %v209, 7
      %v219 = vrot.slane %v218, 2
      %v220 = vrot.slane %v210, 7
      %v221 = vsel %vm217, %v219, %v220
      %v223 = vsub.f32 %v149, %v221
      %v224 = vstv %s148
      %v225 = vmul.f32 %v224, %v223
      %v227 = vcombine.high %v225, %v225
      %v229 = vunpack.c.l.s4 1983009808
      %v230 = vunpack.c.0.s8 %v229
      %v231 = vlaneseq
      %v232 = vshrl.u32 %v231, 7
      %v233 = vsub.s32 %v230, %v232
      %v234 = vrot.slane %v225, %v233
      %v236 = vunpack.c.l.s4 1983009808
      %v237 = vunpack.c.0.s8 %v236
      %v238 = vlaneseq
      %v239 = vshrl.u32 %v238, 7
      %v240 = vsub.s32 %v237, %v239
      %v241 = vrot.slane %v227, %v240
      %v242 = vcombine.high %v234, %v234
      %v243 = vcombine.high %v241, %v241
      %v244 = vrot.slane %v234, 7
      %v245 = vrot.slane %v242, 7
      %v246 = vrot.slane %v241, 7
      %v247 = vrot.slane %v243, 7
      %v252 = vadd.f32 %v185, %v244
      %v253 = vadd.f32 %v186, %v245
      %v254 = vadd.f32 %v187, %v246
      %v255 = vadd.f32 %v188, %v247
      %v260 = vcombine.low %v252, %v253
      %v261 = vcombine.low %v254, %v255
      %v263 = vunpack.c.l.s4 1983009808
      %v264 = vunpack.c.0.s8 %v263
      %v265 = vlaneseq
      %v266 = vshrl.u32 %v265, 7
      %v267 = vsub.s32 %v264, %v266
      %v268 = vrot.slane %v260, %v267
      %v270 = vunpack.c.l.s4 1983009808
      %v271 = vunpack.c.0.s8 %v270
      %v272 = vlaneseq
      %v273 = vshrl.u32 %v272, 7
      %v274 = vsub.s32 %v271, %v273
      %v275 = vrot.slane %v261, %v274
      %v276 = vcombine.low %v268, %v275
      %v277 = vcombine.high %v268, %v275
      %v278 = vrot.slane %v276, 7
      %v279 = vrot.slane %v278, 2
      %v280 = vrot.slane %v277, 7
      %v281 = vsel %vm217, %v279, %v280
      %283 = vst [vmem:[%s146] sm:$0xff] %v281
      %s284 = smul.u32 4, %s14
      %p285 = scmp.lt.s32.totalorder %s284, 7
      %s286 = scalar_select %p285, %s284, 7
      %s287 = smul.addr %s286, 2
      %s288 = scalar_lea.vmem %s2, %s287
      // Predicated region
      $region29: #{branch_1_fun.4} parent=27 // pred_check
        %p289 = pneg %p79
      $region30: #{branch_1_fun.4} parent=27 // pred_check_branch
        %291 = sbr.rel (%p289) target = $region32
      $region31: #{branch_1_fun.4} parent=27 // pred_region
        %s292 = smul.u32 4, %s14
      $region32: #{branch_1_fun.4} parent=27 // pred_fallthru
        _
    $region28: #{branch_1_fun.4} parent=5 // pred_fallthru
      _
    %p293 = scmp.le.s32.totalorder 2, %s9
    // Predicated region
    $region33: #{branch_1_fun.4} parent=5 // pred_check
      %p294 = pneg %p293
    $region34: #{branch_1_fun.4} parent=5 // pred_check_branch
      %296 = sbr.rel (%p294) target = $region36
    $region35: #{branch_1_fun.4} parent=5 // pred_region
      %s297 = ssub.s32 %s9, 2
      // Predicated region
      $region37: #{branch_1_fun.4} parent=35 // pred_check
        %p298 = pneg %p85
      $region38: #{branch_1_fun.4} parent=35 // pred_check_branch
        %300 = sbr.rel (%p298) target = $region40
      $region39: #{branch_1_fun.4} parent=35 // pred_region
        %s301 = smul.u32 4, %s15
        %p302 = scmp.lt.s32.totalorder %s301, 7
        %s303 = scalar_select %p302, %s301, 7
        %s304 = smul.addr %s303, 2
        %s305 = scalar_lea.vmem %s2, %s304
      $region40: #{branch_1_fun.4} parent=35 // pred_fallthru
        _
    $region36: #{branch_1_fun.4} parent=5 // pred_fallthru
      _
  $region6: #{branch_1_fun.4} parent=0 // loop_footer
    %s13 = sadd.s32 1, %s9
  $region7: #{branch_1_fun.4} parent=0 // loop_footer_branch
    %8 = sbr.rel target = $region3
  $region8: #{branch_1_fun.4} parent=0 // loop_exit
    _

</llo_original>
